<compile_context>
chip_gen: v7x
topology: tpu7x:2x2x1
jax: 0.10.0
libtpu: 0.0.40
codegen_flags: <defaults>
</compile_context>

<pallas_src>
import math
from functools import partial

import jax
import jax.numpy as jnp
from jax.experimental import pallas as pl
from jax.experimental.pallas import tpu as pltpu

LANE = 128      # vreg / MXU lane width
SUBLANE = 8     # f32 sublane count


def _round_up(x, m):
    return ((x + m - 1) // m) * m


def _vmem_limit_bytes():
    """Generation-aware VMEM limit: ~3/4 of physical VMEM, capped at 100 MiB."""
    try:
        cap = int(pltpu.get_tpu_info().vmem_capacity_bytes)
    except Exception:
        cap = 64 * 1024 * 1024          # conservative fallback (v7x physical VMEM)
    return int(max(32 * 1024 * 1024, min(cap * 3 // 4, 100 * 1024 * 1024)))


def _conv_same_kernel(x_hbm, w_ref, b_ref, o_ref, xbuf, acc_ref, dma_sem, *,
                      KHq, KWq, Tr, Wo_pad, Hwin, Kc, Cout_t):
    """One (batch, output-row-tile, Cout-tile) grid step.

    x_hbm : (N, Hx, Wx, Kc)          folded input, left in HBM (pl.ANY)
    w_ref : (KHq, KWq, Kc, Cout_t)   folded HWIO weight tile (VMEM)
    b_ref : (1, Cout_t)              bias tile, f32
    o_ref : (1, Tr*Wo_pad, Cout_t)   lane-dense output slab for this tile
    xbuf  : (Hwin, Wx, Kc)           VMEM scratch: halo'd row window (Hwin = Tr+KHq-1)
    acc_ref:(Tr*Wo_pad, Cout_t) f32  bounded VMEM accumulator
    """
    n = pl.program_id(0)
    rt = pl.program_id(1)
    ct = pl.program_id(2)

    # Halo'd row window: fetched once per (n, rt) group (ct == 0) and reused across
    # all Cout tiles of the group (scratch persists across grid steps).
    @pl.when(ct == 0)
    def _fetch():
        r0 = rt * Tr                       # HBM DMA base; needs no alignment
        cp = pltpu.make_async_copy(x_hbm.at[n, pl.ds(r0, Hwin)], xbuf, dma_sem)
        cp.start()
        cp.wait()
        # TODO(synk): prefetching the next group's window would hide this DMA but
        # needs per-core state that is unsafe under megacore sharding of rt; left
        # synchronous (amortized over the CT Cout tiles of the group).

    bias_row = b_ref[...].astype(jnp.float32)            # (1, Cout_t)

    # Static tap loop: each tap is one (M, Kc) x (Kc, Cout_t) MXU matmul with f32
    # accumulation into VMEM scratch.  All slice offsets are static; with the
    # wrapper's W-tap fold (small-Cin layers) pw == 0, so the reshape below is a
    # free layout relabel (Wo_pad is a multiple of 8).
    M = Tr * Wo_pad
    first = True
    for ph in range(KHq):
        for pw in range(KWq):
            patch = xbuf[pl.ds(ph, Tr), pl.ds(pw, Wo_pad), :]     # (Tr, Wo_pad, Kc)
            contrib = jnp.dot(patch.reshape(M, Kc), w_ref[ph, pw],
                              preferred_element_type=jnp.float32)
            if first:
                acc_ref[...] = contrib + bias_row                 # bias in first tap
                first = False
            else:
                acc_ref[...] += contrib

    o_ref[0] = acc_ref[...].astype(o_ref.dtype)


@partial(jax.jit, static_argnums=(3,), static_argnames=("compute_dtype",))
def conv2d_static_same_padding(x_nchw, weight_oihw, bias, stride, *, compute_dtype=None):
    """Forward pass of Conv2dStaticSamePadding (groups=1, dilation=1). NCHW in/out.

    compute_dtype: cast activations/weights (e.g. jnp.bfloat16) while keeping f32
    accumulation — recommended for v6e/v7x inference; default (None) keeps f32.
    """
    sh, sw = (stride, stride) if isinstance(stride, int) else tuple(stride)
    N, Cin, H, W = x_nchw.shape
    Cout, Cin_w, KH, KW = weight_oihw.shape
    # TODO(synk): groups > 1 / dilation > 1 not implemented (module default is
    # groups=1 and the module never forwards dilation to nn.Conv2d).
    assert Cin_w == Cin, "groups > 1 is not supported"

    # ---- static "same" padding (exact PyTorch arithmetic; negative => crop) ----
    Ho = -(-H // sh)
    Wo = -(-W // sw)
    extra_v = (Ho - 1) * sh - H + KH
    extra_h = (Wo - 1) * sw - W + KW
    top, left = extra_v // 2, extra_h // 2
    bottom, right = extra_v - top, extra_h - left
    Hp, Wp = H + extra_v, W + extra_h

    x = jnp.transpose(x_nchw, (0, 2, 3, 1))               # NCHW -> NHWC
    x = jnp.pad(x, ((0, 0),
                    (max(top, 0), max(bottom, 0)),
                    (max(left, 0), max(right, 0)),
                    (0, 0)))
    x = x[:, max(-top, 0):max(-top, 0) + Hp, max(-left, 0):max(-left, 0) + Wp, :]

    # ---- space-to-depth: fold the stride into channels => stride-1 conv ----
    KHq = -(-KH // sh)
    KWq = -(-KW // sw)
    Cs = sh * sw * Cin
    Hq = -(-Hp // sh)
    Wq = -(-Wp // sw)
    x = jnp.pad(x, ((0, 0), (0, Hq * sh - Hp), (0, Wq * sw - Wp), (0, 0)))
    x = (x.reshape(N, Hq, sh, Wq, sw, Cin)
          .transpose(0, 1, 3, 2, 4, 5)
          .reshape(N, Hq, Wq, Cs))

    w = jnp.transpose(weight_oihw, (2, 3, 1, 0))          # OIHW -> HWIO
    w = jnp.pad(w, ((0, KHq * sh - KH), (0, KWq * sw - KW), (0, 0), (0, 0)))
    w = (w.reshape(KHq, sh, KWq, sw, Cin, Cout)
          .transpose(0, 2, 1, 3, 4, 5)
          .reshape(KHq, KWq, Cs, Cout))

    # ---- small-Cin W-tap fold: fill the MXU K dim with real taps ----
    # Only applied when it does not widen the 128-padded channel count (i.e. it is
    # free in HBM bytes); it also removes all sublane-misaligned W slices and the
    # per-tap relayouts in the kernel for these layers.
    if KWq > 1 and KWq * Cs <= _round_up(Cs, LANE):
        x = jnp.concatenate([x[:, :, pw:pw + Wo, :] for pw in range(KWq)], axis=-1)
        w = w.reshape(KHq, 1, KWq * Cs, Cout)
        Cs, KWq = KWq * Cs, 1

    # ---- lane alignment / Cout tiling ----
    Kc_pad = _round_up(Cs, LANE)
    Cout_pad = _round_up(Cout, LANE)
    Cout_t = 256 if Cout_pad % 256 == 0 else LANE         # 256 feeds v6e/v7x MXU
    CT = Cout_pad // Cout_t

    # ---- output-row tiling (bounded accumulator) ----
    Wo_pad = _round_up(Wo, SUBLANE)
    Tr = max(1, min(Ho, 512 // Wo_pad))                   # cap M = Tr*Wo_pad ~ 512
    while Tr * Wo_pad < 128 and Tr < Ho:                  # ...but keep M >= 128
        Tr += 1
    Ho_pad = _round_up(Ho, Tr)
    RT = Ho_pad // Tr
    Hwin = Tr + KHq - 1                                   # halo'd input rows / tile
    M = Tr * Wo_pad

    # ---- pad x to exactly the extents the kernel reads ----
    Hx = Ho_pad + KHq - 1
    Wx = Wo_pad + KWq - 1
    x = jnp.pad(x, ((0, 0), (0, Hx - Hq), (0, Wx - x.shape[2]), (0, Kc_pad - Cs)))
    w = jnp.pad(w, ((0, 0), (0, 0), (0, Kc_pad - Cs), (0, Cout_pad - Cout)))
    b = jnp.pad(bias, (0, Cout_pad - Cout)).reshape(1, Cout_pad).astype(jnp.float32)

    if compute_dtype is not None:
        x = x.astype(compute_dtype)
        w = w.astype(compute_dtype)

    # ---- BlockSpecs ----
    w_block = (KHq, KWq, Kc_pad, Cout_t)
    w_index = lambda n, rt, ct: (0, 0, 0, ct)
    # Single-buffer the weights when they are grid-invariant (CT == 1) and big
    # enough for the second pipeline buffer to matter; when CT > 1 the Cout tiles
    # stream per grid step, so double buffering is useful.  Bias is <= 1 KiB, so
    # its default buffering is irrelevant.
    w_bytes = math.prod(w_block) * w.dtype.itemsize
    if CT == 1 and w_bytes >= (1 << 20):
        w_spec = pl.BlockSpec(w_block, w_index, pipeline_mode=pl.Buffered(1))
    else:
        w_spec = pl.BlockSpec(w_block, w_index)
    b_spec = pl.BlockSpec((1, Cout_t), lambda n, rt, ct: (0, ct))

    kernel = partial(_conv_same_kernel, KHq=KHq, KWq=KWq, Tr=Tr, Wo_pad=Wo_pad,
                     Hwin=Hwin, Kc=Kc_pad, Cout_t=Cout_t)

    out_flat = pl.pallas_call(
        kernel,
        out_shape=jax.ShapeDtypeStruct((N, Ho_pad * Wo_pad, Cout_pad), x_nchw.dtype),
        grid=(N, RT, CT),
        in_specs=[
            pl.BlockSpec(memory_space=pl.ANY),   # x stays in HBM; halo DMA'd per tile
            w_spec,
            b_spec,
        ],
        out_specs=pl.BlockSpec((1, M, Cout_t), lambda n, rt, ct: (n, rt, ct)),
        scratch_shapes=[
            pltpu.VMEM((Hwin, Wx, Kc_pad), x.dtype),    # halo'd input row window
            pltpu.VMEM((M, Cout_t), jnp.float32),       # bounded f32 accumulator
            pltpu.SemaphoreType.DMA,                    # input-window DMA semaphore
        ],
        compiler_params=pltpu.CompilerParams(
            # Batch & row tiles shard across v7x's two TensorCores; with halo
            # tiling, per-core input DMA scales with the tile, not the image.
            dimension_semantics=("parallel", "parallel", "arbitrary"),
            vmem_limit_bytes=_vmem_limit_bytes(),
        ),
    )(x, w, b)

    out = out_flat.reshape(N, Ho_pad, Wo_pad, Cout_pad)[:, :Ho, :Wo, :Cout]
    return jnp.transpose(out, (0, 3, 1, 2))               # NHWC -> NCHW


def _reference(x, w, b, sh, sw):
    """XLA reference with the module's static same-padding arithmetic."""
    _, _, H, W = x.shape
    KH, KW = w.shape[2], w.shape[3]
    ev = (math.ceil(H / sh) - 1) * sh - H + KH
    eh = (math.ceil(W / sw) - 1) * sw - W + KW
    top, left = ev // 2, eh // 2
    xp = jnp.pad(x, ((0, 0), (0, 0), (top, ev - top), (left, eh - left)))
    out = jax.lax.conv_general_dilated(
        xp, w, window_strides=(sh, sw), padding="VALID",
        dimension_numbers=("NCHW", "OIHW", "NCHW"),
        precision=jax.lax.Precision.HIGHEST)
    return out + b[None, :, None, None]


if __name__ == "__main__":
    key = jax.random.PRNGKey(0)

    def make_case(k, n, cin, cout, hw, ksz):
        kx, kw, kb = jax.random.split(k, 3)
        xx = jax.random.normal(kx, (n, cin, hw, hw), dtype=jnp.float32)
        ww = 0.1 * jax.random.normal(kw, (cout, cin, ksz, ksz), dtype=jnp.float32)
        bb = 0.1 * jax.random.normal(kb, (cout,), dtype=jnp.float32)
        return xx, ww, bb

    k0, k1, k2 = jax.random.split(key, 3)

    # 1) stride-2 3x3 downsampling conv: stride fold + W-tap fold + KHq=2 halo DMA.
    x, w, b = make_case(k0, 2, 4, 8, 16, 3)
    out = jax.block_until_ready(conv2d_static_same_padding(x, w, b, (2, 2)))
    ref = _reference(x, w, b, 2, 2)
    assert out.shape == ref.shape, (out.shape, ref.shape)
    assert float(jnp.max(jnp.abs(out - ref))) < 2e-4

    # 2) stride-1 3x3, small channels: KHq=3 halo with the W-tap fold.
    x1, w1, b1 = make_case(k1, 2, 4, 8, 16, 3)
    out1 = jax.block_until_ready(conv2d_static_same_padding(x1, w1, b1, (1, 1)))
    ref1 = _reference(x1, w1, b1, 1, 1)
    assert out1.shape == ref1.shape
    assert float(jnp.max(jnp.abs(out1 - ref1))) < 2e-4

    # 3) stride-1 3x3, channels too wide for the W fold: per-tap W-slice path.
    x2, w2, b2 = make_case(k2, 1, 48, 40, 16, 3)
    out2 = jax.block_until_ready(conv2d_static_same_padding(x2, w2, b2, (1, 1)))
    ref2 = _reference(x2, w2, b2, 1, 1)
    assert out2.shape == ref2.shape
    assert float(jnp.max(jnp.abs(out2 - ref2))) < 5e-4

    # 4) bf16 compute (recommended for v6e/v7x inference), f32 accumulation.
    out_bf16 = jax.block_until_ready(
        conv2d_static_same_padding(x, w, b, (2, 2), compute_dtype=jnp.bfloat16))
    assert float(jnp.max(jnp.abs(out_bf16 - ref))) < 8e-2

    print("KERNEL_OK")
</pallas_src>

<mosaic_0001>
module attributes {stable_mosaic.version = 11 : i64} {
  func.func @_conv_same_kernel(%arg0: i32, %arg1: i32, %arg2: i32, %arg3: memref<2x9x8x128xf32, #tpu.memory_space<any>>, %arg4: memref<2x1x128x128xf32, #tpu.memory_space<vmem>>, %arg5: memref<1x128xf32, #tpu.memory_space<vmem>>, %arg6: memref<1x64x128xf32, #tpu.memory_space<vmem>>, %arg7: memref<9x8x128xf32, #tpu.memory_space<vmem>>, %arg8: memref<64x128xf32, #tpu.memory_space<vmem>>, %arg9: memref<!tpu.dma_semaphore, #tpu.memory_space<semaphore_mem>>) attributes {dimension_semantics = [#tpu.dimension_semantics<parallel>, #tpu.dimension_semantics<parallel>, #tpu.dimension_semantics<arbitrary>], iteration_bounds = array<i64: 2, 1, 1>, scalar_prefetch = 0 : i64, scratch_operands = 3 : i64, tpu.core_type = #tpu.core_type<tc>, window_params = [{}, {transform_indices = @transform_1, window_bounds = array<i64: 2, 1, 128, 128>}, {transform_indices = @transform_2, window_bounds = array<i64: 1, 128>}, {transform_indices = @transform_3, window_bounds = array<i64: 1, 64, 128>}]} {
    %c0_i32 = arith.constant 0 : i32
    %0 = arith.cmpi eq, %arg2, %c0_i32 : i32
    %1 = arith.extui %0 : i1 to i32
    %c0_i32_0 = arith.constant 0 : i32
    %2 = arith.cmpi ne, %1, %c0_i32_0 : i32
    scf.if %2 {
      %c8_i32 = arith.constant 8 : i32
      %24 = arith.muli %arg1, %c8_i32 : i32
      %c0_i32_27 = arith.constant 0 : i32
      %c0_i32_28 = arith.constant 0 : i32
      %25 = tpu.memref_slice %arg3[%arg0, %24, %c0_i32_27, %c0_i32_28] : memref<2x9x8x128xf32, #tpu.memory_space<any>> -> memref<1x9x8x128xf32, #tpu.memory_space<any>>
      %26 = tpu.memref_squeeze %25 : memref<1x9x8x128xf32, #tpu.memory_space<any>> -> memref<9x8x128xf32, #tpu.memory_space<any>>
      tpu.enqueue_dma source(%26 : memref<9x8x128xf32, #tpu.memory_space<any>>) target(%arg7 : memref<9x8x128xf32, #tpu.memory_space<vmem>>) target_semaphore(%arg9 : memref<!tpu.dma_semaphore, #tpu.memory_space<semaphore_mem>>)
      %c0_i32_29 = arith.constant 0 : i32
      %c0_i32_30 = arith.constant 0 : i32
      %27 = tpu.memref_slice %arg3[%arg0, %24, %c0_i32_29, %c0_i32_30] : memref<2x9x8x128xf32, #tpu.memory_space<any>> -> memref<1x9x8x128xf32, #tpu.memory_space<any>>
      %28 = tpu.memref_squeeze %27 : memref<1x9x8x128xf32, #tpu.memory_space<any>> -> memref<9x8x128xf32, #tpu.memory_space<any>>
      tpu.wait_dma2 semaphore(%arg9 : memref<!tpu.dma_semaphore, #tpu.memory_space<semaphore_mem>>) src(%28 : memref<9x8x128xf32, #tpu.memory_space<any>>) dst(%arg7 : memref<9x8x128xf32, #tpu.memory_space<vmem>>)
    } else {
    }
    %c0 = arith.constant 0 : index
    %c0_1 = arith.constant 0 : index
    %3 = vector.load %arg5[%c0, %c0_1] : memref<1x128xf32, #tpu.memory_space<vmem>>, vector<1x128xf32>
    %c0_2 = arith.constant 0 : index
    %c0_3 = arith.constant 0 : index
    %c0_4 = arith.constant 0 : index
    %4 = vector.load %arg7[%c0_2, %c0_3, %c0_4] : memref<9x8x128xf32, #tpu.memory_space<vmem>>, vector<8x8x128xf32>
    %5 = vector.shape_cast %4 : vector<8x8x128xf32> to vector<64x128xf32>
    %c0_5 = arith.constant 0 : index
    %c0_6 = arith.constant 0 : index
    %c0_7 = arith.constant 0 : index
    %c0_8 = arith.constant 0 : index
    %6 = vector.load %arg4[%c0_5, %c0_6, %c0_7, %c0_8] : memref<2x1x128x128xf32, #tpu.memory_space<vmem>>, vector<1x1x128x128xf32>
    %7 = vector.shape_cast %6 : vector<1x1x128x128xf32> to vector<128x128xf32>
    %cst = arith.constant dense<0.000000e+00> : vector<64x128xf32>
    %8 = tpu.matmul %5, %7, %cst {dimension_numbers = #tpu.dot_dimension_numbers<[1], [0], [0], [1], [0, 0, 1, 1], [], []>} : vector<64x128xf32>, vector<128x128xf32>, vector<64x128xf32> -> vector<64x128xf32>
    %9 = vector.broadcast %3 : vector<1x128xf32> to vector<64x128xf32>
    %10 = arith.addf %8, %9 : vector<64x128xf32>
    %c0_9 = arith.constant 0 : index
    %c0_10 = arith.constant 0 : index
    %11 = vector.load %arg8[%c0_9, %c0_10] : memref<64x128xf32, #tpu.memory_space<vmem>>, vector<64x128xf32>
    tpu.vector_store %arg8[%c0_9, %c0_10], %10 {strides = array<i32>} : memref<64x128xf32, #tpu.memory_space<vmem>>, vector<64x128xf32>,
    %c1 = arith.constant 1 : index
    %c0_11 = arith.constant 0 : index
    %c0_12 = arith.constant 0 : index
    %12 = vector.load %arg7[%c1, %c0_11, %c0_12] : memref<9x8x128xf32, #tpu.memory_space<vmem>>, vector<8x8x128xf32>
    %13 = vector.shape_cast %12 : vector<8x8x128xf32> to vector<64x128xf32>
    %c1_13 = arith.constant 1 : index
    %c0_14 = arith.constant 0 : index
    %c0_15 = arith.constant 0 : index
    %c0_16 = arith.constant 0 : index
    %14 = vector.load %arg4[%c1_13, %c0_14, %c0_15, %c0_16] : memref<2x1x128x128xf32, #tpu.memory_space<vmem>>, vector<1x1x128x128xf32>
    %15 = vector.shape_cast %14 : vector<1x1x128x128xf32> to vector<128x128xf32>
    %cst_17 = arith.constant dense<0.000000e+00> : vector<64x128xf32>
    %16 = tpu.matmul %13, %15, %cst_17 {dimension_numbers = #tpu.dot_dimension_numbers<[1], [0], [0], [1], [0, 0, 1, 1], [], []>} : vector<64x128xf32>, vector<128x128xf32>, vector<64x128xf32> -> vector<64x128xf32>
    %c0_18 = arith.constant 0 : index
    %c0_19 = arith.constant 0 : index
    %17 = vector.load %arg8[%c0_18, %c0_19] : memref<64x128xf32, #tpu.memory_space<vmem>>, vector<64x128xf32>
    %18 = arith.addf %17, %16 : vector<64x128xf32>
    %c0_20 = arith.constant 0 : index
    %c0_21 = arith.constant 0 : index
    %19 = vector.load %arg8[%c0_20, %c0_21] : memref<64x128xf32, #tpu.memory_space<vmem>>, vector<64x128xf32>
    tpu.vector_store %arg8[%c0_20, %c0_21], %18 {strides = array<i32>} : memref<64x128xf32, #tpu.memory_space<vmem>>, vector<64x128xf32>,
    %c0_22 = arith.constant 0 : index
    %c0_23 = arith.constant 0 : index
    %20 = vector.load %arg8[%c0_22, %c0_23] : memref<64x128xf32, #tpu.memory_space<vmem>>, vector<64x128xf32>
    %c0_24 = arith.constant 0 : index
    %c0_25 = arith.constant 0 : index
    %c0_26 = arith.constant 0 : index
    %21 = vector.load %arg6[%c0_24, %c0_25, %c0_26] : memref<1x64x128xf32, #tpu.memory_space<vmem>>, vector<1x64x128xf32>
    %22 = vector.shape_cast %21 : vector<1x64x128xf32> to vector<64x128xf32>
    %23 = vector.shape_cast %20 : vector<64x128xf32> to vector<1x64x128xf32>
    tpu.vector_store %arg6[%c0_24, %c0_25, %c0_26], %23 {strides = array<i32>} : memref<1x64x128xf32, #tpu.memory_space<vmem>>, vector<1x64x128xf32>,
    return
  }
  func.func @transform_1(%arg0: i32, %arg1: i32, %arg2: i32) -> (i32, i32, i32, i32) {
    %c0_i32 = arith.constant 0 : i32
    %c0_i32_0 = arith.constant 0 : i32
    %c0_i32_1 = arith.constant 0 : i32
    %c0_i32_2 = arith.constant 0 : i32
    return %c0_i32, %c0_i32_0, %c0_i32_1, %arg2 : i32, i32, i32, i32
  }
  func.func @transform_2(%arg0: i32, %arg1: i32, %arg2: i32) -> (i32, i32) {
    %c0_i32 = arith.constant 0 : i32
    %c0_i32_0 = arith.constant 0 : i32
    return %c0_i32, %arg2 : i32, i32
  }
  func.func @transform_3(%arg0: i32, %arg1: i32, %arg2: i32) -> (i32, i32, i32) {
    %c0_i32 = arith.constant 0 : i32
    return %arg0, %arg1, %arg2 : i32, i32, i32
  }
}

</mosaic_0001>

<llo_original>
// kernel: conv2d_static_same_padding.1
$region0: #{conv2d_static_same_padding.1}
  #allocation0 [shape = 'u32[]', space=smem, size = 0x4, offset = 0x4, fixed_abs, tag = 'smem constant byte address 0x4 - core index']
  #allocation1 [shape = 'u32[144,128]{1,0:T(1,128)}', space=vmem, size = 0x12000, scoped, tag = 'internal scratch']
  #allocation2 [shape = 'f32[9,8,128]{2,1,0:T(8,128)}', space=vmem, size = 0x9000, scoped, tag = 'scratch operand']
  #allocation3 [shape = 'f32[64,128]{1,0:T(8,128)}', space=vmem, size = 0x8000, scoped, tag = 'scratch operand']
  #allocation4 [shape = 's32[1]{0}', space=sflag, size = 0x4, scoped, tag = 'scratch operand']
  #allocation5 [shape = 's32[]', space=sflag, size = 0x4, offset = 0, fixed_abs, tag = 'sflag constant byte address 0x0 - dummy sync flag']
  %s0 = inlined_call_operand.vmem [shape: f32[2,9,8,128], index: 0, kind: input, shape index: {}]
  %s1 = inlined_call_operand.vmem [shape: f32[2,1,128,128], index: 1, kind: input, shape index: {}]
  %s2 = inlined_call_operand.vmem [shape: f32[1,128], index: 2, kind: input, shape index: {}]
  %s3 = inlined_call_operand.vmem [shape: f32[2,64,128], index: 3, kind: output, shape index: {}]
  %s4 = sld [smem:[#allocation0]]
  $region79: #{conv2d_static_same_padding.1} parent=0
    _
  %s6 = ssub.s32 1, %s4
  %s7 = scalar_select 0, %s6, %s4
  loop: start=0, step=1, limit=4
  $region2: #{conv2d_static_same_padding.1} parent=0 // loop_pre_header
    _
  $region3: #{conv2d_static_same_padding.1} parent=0 // loop_header
    %s9 = sphi 0, %s13
    %p10 = scmp.ge.s32.totalorder %s9, 4
    %s16 = sphi 0, %s35
    %s17 = sphi 0, %s31
    %s18 = sphi 0, %s27
    %s19 = sphi 0, %s16
    %s20 = sphi 0, %s17
    %s21 = sphi 0, %s18
    %s22 = sphi 0, %s19
    %s23 = sphi 0, %s20
    %s24 = sphi 0, %s21
    %s38 = sphi 0, %s40
    %s41 = sphi 0, %s38
    %s42 = sphi 0, %s41
    %s58 = sphi 0, %s42
    %s64 = sphi 0, %s66
    %s67 = sphi 0, %s64
    %s68 = sphi 0, %s67
    %s84 = sphi 0, %s68
    %s94 = sphi 0, %s96
    %s97 = sphi 0, %s94
    %s98 = sphi 0, %s97
    %s114 = sphi 0, %s98
  $region4: #{conv2d_static_same_padding.1} parent=0 // loop_header_branch
    %12 = sbr.rel (%p10) target = $region8
  $region5: #{conv2d_static_same_padding.1} parent=0 // loop_body
    %s14 = ssub.s32 %s9, 1
    %s15 = ssub.s32 %s9, 2
    %s25 = sadd.s32 1, %s18
    %p26 = scmp.ge.s32.totalorder %s25, 1
    %s27 = scalar_select %p26, 0, %s25
    %s28 = sadd.s32 1, %s17
    %s29 = scalar_select %p26, %s28, %s17
    %p30 = scmp.ge.s32.totalorder %s29, 1
    %s31 = scalar_select %p30, 0, %s29
    %s32 = sadd.s32 1, %s16
    %s33 = scalar_select %p30, %s32, %s16
    %p34 = scmp.ge.s32.totalorder %s33, 2
    %s35 = scalar_select %p34, 0, %s33
    %s36 = ssub.s32 %s18, %s27
    %p37 = scmp.eq.s32.totalorder %s36, 0
    %s39 = sadd.s32 %s38, 1
    %s40 = scalar_select %p37, %s38, %s39
    %p43 = pneg %p37
    %p44 = scmp.eq.s32.totalorder %s9, 1
    %p45 = por %p43, %p44
    %p46 = scmp.ne.s32.totalorder %s38, %s41
    %p47 = scmp.eq.s32.totalorder %s9, 0
    %p48 = por %p46, %p47
    %p49 = scmp.ne.s32.totalorder %s38, %s41
    %p50 = scmp.eq.s32.totalorder %s14, 1
    %p51 = por %p49, %p50
    %p52 = scmp.ne.s32.totalorder %s41, %s42
    %p53 = scmp.eq.s32.totalorder %s14, 0
    %p54 = por %p52, %p53
    %p55 = scmp.ne.s32.totalorder %s41, %s42
    %p56 = scmp.eq.s32.totalorder %s15, 1
    %p57 = por %p55, %p56
    %p59 = scmp.ne.s32.totalorder %s42, %s58
    %p60 = scmp.eq.s32.totalorder %s15, 0
    %p61 = por %p59, %p60
    %s62 = ssub.s32 %s18, %s27
    %p63 = scmp.eq.s32.totalorder %s62, 0
    %s65 = sadd.s32 %s64, 1
    %s66 = scalar_select %p63, %s64, %s65
    %p69 = pneg %p63
    %p70 = scmp.eq.s32.totalorder %s9, 1
    %p71 = por %p69, %p70
    %p72 = scmp.ne.s32.totalorder %s64, %s67
    %p73 = scmp.eq.s32.totalorder %s9, 0
    %p74 = por %p72, %p73
    %p75 = scmp.ne.s32.totalorder %s64, %s67
    %p76 = scmp.eq.s32.totalorder %s14, 1
    %p77 = por %p75, %p76
    %p78 = scmp.ne.s32.totalorder %s67, %s68
    %p79 = scmp.eq.s32.totalorder %s14, 0
    %p80 = por %p78, %p79
    %p81 = scmp.ne.s32.totalorder %s67, %s68
    %p82 = scmp.eq.s32.totalorder %s15, 1
    %p83 = por %p81, %p82
    %p85 = scmp.ne.s32.totalorder %s68, %s84
    %p86 = scmp.eq.s32.totalorder %s15, 0
    %p87 = por %p85, %p86
    %s88 = ssub.s32 %s16, %s35
    %s89 = ssub.s32 %s17, %s31
    %s90 = sor.u32 %s88, %s89
    %s91 = ssub.s32 %s18, %s27
    %s92 = sor.u32 %s90, %s91
    %p93 = scmp.eq.s32.totalorder %s92, 0
    %s95 = sadd.s32 %s94, 1
    %s96 = scalar_select %p93, %s94, %s95
    %p99 = pneg %p93
    %p100 = scmp.eq.s32.totalorder %s9, 1
    %p101 = por %p99, %p100
    %p102 = scmp.ne.s32.totalorder %s94, %s97
    %p103 = scmp.eq.s32.totalorder %s9, 0
    %p104 = por %p102, %p103
    %p105 = scmp.ne.s32.totalorder %s94, %s97
    %p106 = scmp.eq.s32.totalorder %s14, 1
    %p107 = por %p105, %p106
    %p108 = scmp.ne.s32.totalorder %s97, %s98
    %p109 = scmp.eq.s32.totalorder %s14, 0
    %p110 = por %p108, %p109
    %p111 = scmp.ne.s32.totalorder %s97, %s98
    %p112 = scmp.eq.s32.totalorder %s15, 1
    %p113 = por %p111, %p112
    %p115 = scmp.ne.s32.totalorder %s98, %s114
    %p116 = scmp.eq.s32.totalorder %s15, 0
    %p117 = por %p115, %p116
    %p118 = scmp.le.s32.totalorder 1, %s9
    %p119 = scmp.lt.s32.totalorder %s9, 3
    %p120 = pnand %p118, %p119
    %p121 = pneg %p120
    // Predicated region
    $region9: #{conv2d_static_same_padding.1} parent=5 // pred_check
      _
    $region10: #{conv2d_static_same_padding.1} parent=5 // pred_check_branch
      %123 = sbr.rel (%p120) target = $region12
    $region11: #{conv2d_static_same_padding.1} parent=5 // pred_region
      %s124 = ssub.s32 %s9, 1
      // Predicated region
      $region13: #{conv2d_static_same_padding.1} parent=11 // pred_check
        %p125 = pneg %p54
      $region14: #{conv2d_static_same_padding.1} parent=11 // pred_check_branch
        %127 = sbr.rel (%p125) target = $region16
      $region15: #{conv2d_static_same_padding.1} parent=11 // pred_region
        %p128 = scmp.lt.s32.totalorder %s21, 0
        %s129 = scalar_select %p128, %s21, 0
        %s130 = smul.addr %s129, 8
        %s131 = scalar_lea.vmem %s1, %s130
      $region16: #{conv2d_static_same_padding.1} parent=11 // pred_fallthru
        _
      // Predicated region
      $region17: #{conv2d_static_same_padding.1} parent=11 // pred_check
        %p132 = pneg %p80
      $region18: #{conv2d_static_same_padding.1} parent=11 // pred_check_branch
        %134 = sbr.rel (%p132) target = $region20
      $region19: #{conv2d_static_same_padding.1} parent=11 // pred_region
        %p135 = scmp.lt.s32.totalorder %s21, 0
        %s136 = scalar_select %p135, %s21, 0
        %s137 = scalar_lea.vmem %s2, %s136
      $region20: #{conv2d_static_same_padding.1} parent=11 // pred_fallthru
        _
    $region12: #{conv2d_static_same_padding.1} parent=5 // pred_fallthru
      _
    %p138 = scmp.lt.s32.totalorder %s9, 2
    // Predicated region
    $region21: #{conv2d_static_same_padding.1} parent=5 // pred_check
      %p139 = pneg %p138
    $region22: #{conv2d_static_same_padding.1} parent=5 // pred_check_branch
      %141 = sbr.rel (%p139) target = $region24
    $region23: #{conv2d_static_same_padding.1} parent=5 // pred_region
      _
    $region24: #{conv2d_static_same_padding.1} parent=5 // pred_fallthru
      _
    %p142 = scmp.le.s32.totalorder 1, %s9
    %p143 = scmp.lt.s32.totalorder %s9, 3
    %p144 = pnand %p142, %p143
    %p145 = pneg %p144
    // Predicated region
    $region25: #{conv2d_static_same_padding.1} parent=5 // pred_check
      _
    $region26: #{conv2d_static_same_padding.1} parent=5 // pred_check_branch
      %147 = sbr.rel (%p144) target = $region28
    $region27: #{conv2d_static_same_padding.1} parent=5 // pred_region
      %s148 = ssub.s32 %s9, 1
      %p149 = scmp.lt.s32.totalorder %s21, 0
      %s150 = scalar_select %p149, %s21, 0
      %s151 = smul.addr %s150, 8
      %s152 = scalar_lea.vmem %s1, %s151
      %p153 = pneg %p54
      %p154 = pneg %p51
      %p155 = scmp.lt.s32.totalorder %s21, 0
      %s156 = scalar_select %p155, %s21, 0
      %s157 = scalar_lea.vmem %s2, %s156
      %p158 = pneg %p80
      %p159 = pneg %p77
      %p160 = pneg %p110
      %p161 = pneg %p107
      %s162 = smul.u32 8, %s20
      %p163 = scmp.lt.s32.totalorder %s19, 1
      %s164 = scalar_select %p163, %s19, 1
      %p165 = scmp.lt.s32.totalorder %s162, 7
      %s166 = scalar_select %p165, %s162, 7
      %p167 = scmp.lt.s32.totalorder %s21, 0
      %s168 = scalar_select %p167, %s21, 0
      %s169 = sadd.s32 %s168, %s166
      %s170 = smul.addr %s164, 8
      %s171 = sadd.s32 %s169, %s170
      %s172 = smul.addr %s171, 8
      %s173 = scalar_lea.vmem %s3, %s172
      %p174 = scmp.lt.s32.totalorder %s21, 0
      %s175 = scalar_select %p174, %s21, 0
      %s176 = smul.addr %s175, 8
      %s177 = scalar_lea.vmem %s1, %s176
      %p178 = scmp.lt.s32.totalorder %s21, 0
      %s179 = scalar_select %p178, %s21, 0
      %s180 = scalar_lea.vmem %s2, %s179
      %s181 = smul.u32 8, %s20
      %p182 = scmp.lt.s32.totalorder %s19, 1
      %s183 = scalar_select %p182, %s19, 1
      %p184 = scmp.lt.s32.totalorder %s181, 7
      %s185 = scalar_select %p184, %s181, 7
      %p186 = scmp.lt.s32.totalorder %s21, 0
      %s187 = scalar_select %p186, %s21, 0
      %s188 = sadd.s32 %s187, %s185
      %s189 = smul.addr %s183, 8
      %s190 = sadd.s32 %s188, %s189
      %s191 = smul.addr %s190, 8
      %s192 = scalar_lea.vmem %s3, %s191
      %s193 = smul.u32 8, %s20
      %p194 = scmp.eq.s32.totalorder %s21, 0
      // Predicated region
      $region29: #{conv2d_static_same_padding.1} parent=27 // pred_check
        %p195 = pneg %p194
      $region30: #{conv2d_static_same_padding.1} parent=27 // pred_check_branch
        %197 = sbr.rel (%p195) target = $region32
      $region31: #{conv2d_static_same_padding.1} parent=27 // pred_region
        %s198 = smul.u32 %s20, 8
        %s199 = smul.u32 %s198, 8
        %s200 = smul.u32 %s19, 72
        %s201 = sadd.s32 %s199, %s200
        %s202 = scalar_lea.vmem %s0, %s201
        %p204 = scmp.lt.u32.totalorder 72, 8
        %p205 = pneg %p204
        // Predicated region
        $region33: #{conv2d_static_same_padding.1} parent=31 // pred_check
          _
        $region34: #{conv2d_static_same_padding.1} parent=31 // pred_check_branch
          %207 = sbr.rel (%p204) target = $region36
        $region35: #{conv2d_static_same_padding.1} parent=31 // pred_region
          %s222 = sand.u32 72, 7
          %p223 = scmp.eq.s32.totalorder %s222, 0
          // Predicated region
          $region48: #{conv2d_static_same_padding.1} parent=35 // pred_check
            %p224 = pneg %p223
          $region49: #{conv2d_static_same_padding.1} parent=35 // pred_check_branch
            %226 = sbr.rel (%p224) target = $region51
          $region50: #{conv2d_static_same_padding.1} parent=35 // pred_region
            loop: start=0, step=1, limit=1
            $region52: #{conv2d_static_same_padding.1} parent=50 // loop_pre_header
              _
            $region53: #{conv2d_static_same_padding.1} parent=50 // loop_header
              %s228 = sphi 0, %s232
              %p229 = scmp.ge.s32.totalorder %s228, 1
              %s233 = sphi %s202, %s202
              %s234 = sphi [#allocation2], [#allocation2]
            $region54: #{conv2d_static_same_padding.1} parent=50 // loop_header_branch
              %231 = sbr.rel (%p229) target = $region58
            $region55: #{conv2d_static_same_padding.1} parent=50 // loop_body
              %v235 = vld [vmem:[%s233] sm:$0xff]
              %236 = vst [vmem:[%s234] sm:$0xff] %v235
              %v237 = vld [vmem:[%s233 + $0x8] sm:$0xff]
              %238 = vst [vmem:[%s234 + $0x8] sm:$0xff] %v237
              %v239 = vld [vmem:[%s233 + $0x10] sm:$0xff]
              %240 = vst [vmem:[%s234 + $0x10] sm:$0xff] %v239
              %v241 = vld [vmem:[%s233 + $0x18] sm:$0xff]
              %242 = vst [vmem:[%s234 + $0x18] sm:$0xff] %v241
              %v243 = vld [vmem:[%s233 + $0x20] sm:$0xff]
              %244 = vst [vmem:[%s234 + $0x20] sm:$0xff] %v243
              %v245 = vld [vmem:[%s233 + $0x28] sm:$0xff]
              %246 = vst [vmem:[%s234 + $0x28] sm:$0xff] %v245
              %v247 = vld [vmem:[%s233 + $0x30] sm:$0xff]
              %248 = vst [vmem:[%s234 + $0x30] sm:$0xff] %v247
              %v249 = vld [vmem:[%s233 + $0x38] sm:$0xff]
              %250 = vst [vmem:[%s234 + $0x38] sm:$0xff] %v249
              %v251 = vld [vmem:[%s233 + $0x40] sm:$0xff]
              %252 = vst [vmem:[%s234 + $0x40] sm:$0xff] %v251
            $region56: #{conv2d_static_same_padding.1} parent=50 // loop_footer
              %s232 = sadd.s32 1, %s228
            $region57: #{conv2d_static_same_padding.1} parent=50 // loop_footer_branch
              %227 = sbr.rel target = $region53
            $region58: #{conv2d_static_same_padding.1} parent=50 // loop_exit
              _
          $region51: #{conv2d_static_same_padding.1} parent=35 // pred_fallthru
            _
          %p253 = pneg %p223
          // Predicated region
          $region59: #{conv2d_static_same_padding.1} parent=35 // pred_check
            _
          $region60: #{conv2d_static_same_padding.1} parent=35 // pred_check_branch
            %255 = sbr.rel (%p223) target = $region62
          $region61: #{conv2d_static_same_padding.1} parent=35 // pred_region
            %s256 = sand.u32 72, 7
          $region62: #{conv2d_static_same_padding.1} parent=35 // pred_fallthru
            _
        $region36: #{conv2d_static_same_padding.1} parent=31 // pred_fallthru
          _
        // Predicated region
        $region37: #{conv2d_static_same_padding.1} parent=31 // pred_check
          %p208 = pneg %p204
        $region38: #{conv2d_static_same_padding.1} parent=31 // pred_check_branch
          %210 = sbr.rel (%p208) target = $region40
        $region39: #{conv2d_static_same_padding.1} parent=31 // pred_region
          %s211 = sshllo.u32 0, 72
          loop: start=0, step=1, limit=1
          $region41: #{conv2d_static_same_padding.1} parent=39 // loop_pre_header
            _
          $region42: #{conv2d_static_same_padding.1} parent=39 // loop_header
            %s213 = sphi 0, %s217
            %p214 = scmp.ge.s32.totalorder %s213, 1
            %s218 = sphi %s202, %s202
            %s219 = sphi [#allocation2], [#allocation2]
          $region43: #{conv2d_static_same_padding.1} parent=39 // loop_header_branch
            %216 = sbr.rel (%p214) target = $region47
          $region44: #{conv2d_static_same_padding.1} parent=39 // loop_body
            %v220 = vld [vmem:[%s218] sm:%s211]
            %221 = vst [vmem:[%s219] sm:%s211] %v220
          $region45: #{conv2d_static_same_padding.1} parent=39 // loop_footer
            %s217 = sadd.s32 1, %s213
          $region46: #{conv2d_static_same_padding.1} parent=39 // loop_footer_branch
            %212 = sbr.rel target = $region42
          $region47: #{conv2d_static_same_padding.1} parent=39 // loop_exit
            _
        $region40: #{conv2d_static_same_padding.1} parent=31 // pred_fallthru
          _
        // Predicated region
        $region63: #{conv2d_static_same_padding.1} parent=31 // pred_check
          _
        $region64: #{conv2d_static_same_padding.1} parent=31 // pred_check_branch
          %259 = sbr.rel (0) target = $region66
        $region65: #{conv2d_static_same_padding.1} parent=31 // pred_region
          %260 = vsyncadd [#allocation4], 1152
        $region66: #{conv2d_static_same_padding.1} parent=31 // pred_fallthru
          _
        %s261 = smul.u32 9, 8
        %s262 = smul.u32 %s261, 1
        %s263 = sshll.u32 %s262, 4
        %264 = dma.done [#allocation4], %s263
      $region32: #{conv2d_static_same_padding.1} parent=27 // pred_fallthru
        _
      %v265 = vld [vmem:[%s180] sm:$0x1]
      %v266 = vld [vmem:[#allocation2] sm:$0xff]
      %v267 = vld [vmem:[#allocation2 + $0x8] sm:$0xff]
      %v268 = vld [vmem:[#allocation2 + $0x10] sm:$0xff]
      %v269 = vld [vmem:[#allocation2 + $0x18] sm:$0xff]
      %v270 = vld [vmem:[#allocation2 + $0x20] sm:$0xff]
      %v271 = vld [vmem:[#allocation2 + $0x28] sm:$0xff]
      %v272 = vld [vmem:[#allocation2 + $0x30] sm:$0xff]
      %v273 = vld [vmem:[#allocation2 + $0x38] sm:$0xff]
      %v274 = vld [vmem:[%s177] sm:$0xff]
      %v275 = vld [vmem:[%s177 + $0x8] sm:$0xff]
      %v276 = vld [vmem:[%s177 + $0x10] sm:$0xff]
      %v277 = vld [vmem:[%s177 + $0x18] sm:$0xff]
      %v278 = vld [vmem:[%s177 + $0x20] sm:$0xff]
      %v279 = vld [vmem:[%s177 + $0x28] sm:$0xff]
      %v280 = vld [vmem:[%s177 + $0x30] sm:$0xff]
      %v281 = vld [vmem:[%s177 + $0x38] sm:$0xff]
      %v282 = vld [vmem:[%s177 + $0x40] sm:$0xff]
      %v283 = vld [vmem:[%s177 + $0x48] sm:$0xff]
      %v284 = vld [vmem:[%s177 + $0x50] sm:$0xff]
      %v285 = vld [vmem:[%s177 + $0x58] sm:$0xff]
      %v286 = vld [vmem:[%s177 + $0x60] sm:$0xff]
      %v287 = vld [vmem:[%s177 + $0x68] sm:$0xff]
      %v288 = vld [vmem:[%s177 + $0x70] sm:$0xff]
      %v289 = vld [vmem:[%s177 + $0x78] sm:$0xff]
      %v291 = vlaneseq
      %v292 = vshrl.u32 %v291, 7
      %v293 = vsub.s32 0, %v292
      %v294 = vrot.slane %v265, %v293
      %296 = vmatprep.subr.mxu0 0.0
      %297 = vmatpush1.msra.mxu0 %v274
      %298 = vmatprep.subr.mxu0 0.0
      %299 = vmatpush1.msra.mxu0 %v275
      %300 = vmatprep.subr.mxu0 0.0
      %301 = vmatpush1.msra.mxu0 %v276
      %302 = vmatprep.subr.mxu0 0.0
      %303 = vmatpush1.msra.mxu0 %v277
      %304 = vmatprep.subr.mxu0 0.0
      %305 = vmatpush1.msra.mxu0 %v278
      %306 = vmatprep.subr.mxu0 0.0
      %307 = vmatpush1.msra.mxu0 %v279
      %308 = vmatprep.subr.mxu0 0.0
      %309 = vmatpush1.msra.mxu0 %v280
      %310 = vmatprep.subr.mxu0 0.0
      %311 = vmatpush1.msra.mxu0 %v281
      %312 = vmatprep.subr.mxu0 0.0
      %313 = vmatpush1.msra.mxu0 %v282
      %314 = vmatprep.subr.mxu0 0.0
      %315 = vmatpush1.msra.mxu0 %v283
      %316 = vmatprep.subr.mxu0 0.0
      %317 = vmatpush1.msra.mxu0 %v284
      %318 = vmatprep.subr.mxu0 0.0
      %319 = vmatpush1.msra.mxu0 %v285
      %320 = vmatprep.subr.mxu0 0.0
      %321 = vmatpush1.msra.mxu0 %v286
      %322 = vmatprep.subr.mxu0 0.0
      %323 = vmatpush1.msra.mxu0 %v287
      %324 = vmatprep.subr.mxu0 0.0
      %325 = vmatpush1.msra.mxu0 %v288
      %326 = vmatprep.subr.mxu0 0.0
      %327 = vmatpush1.msra.mxu0 %v289
      %328 = vmatprep.subr.mxu0 0.0
      %329 = vmatpush1.msra.mxu0 0.0
      %330 = vmatprep.subr.mxu0 0.0
      %331 = vmatpush1.msra.mxu0 0.0
      %332 = vmatprep.subr.mxu0 0.0
      %333 = vmatpush1.msra.mxu0 0.0
      %334 = vmatprep.subr.mxu0 0.0
      %335 = vmatpush1.msra.mxu0 0.0
      %336 = vmatprep.subr.mxu0 0.0
      %337 = vmatpush1.msra.mxu0 0.0
      %338 = vmatprep.subr.mxu0 0.0
      %339 = vmatpush1.msra.mxu0 0.0
      %340 = vmatprep.subr.mxu0 0.0
      %341 = vmatpush1.msra.mxu0 0.0
      %342 = vmatprep.subr.mxu0 0.0
      %343 = vmatpush1.msra.mxu0 0.0
      %344 = vmatprep.subr.mxu0 0.0
      %345 = vmatpush1.msra.mxu0 0.0
      %346 = vmatprep.subr.mxu0 0.0
      %347 = vmatpush1.msra.mxu0 0.0
      %348 = vmatprep.subr.mxu0 0.0
      %349 = vmatpush1.msra.mxu0 0.0
      %350 = vmatprep.subr.mxu0 0.0
      %351 = vmatpush1.msra.mxu0 0.0
      %352 = vmatprep.subr.mxu0 0.0
      %353 = vmatpush1.msra.mxu0 0.0
      %354 = vmatprep.subr.mxu0 0.0
      %355 = vmatpush1.msra.mxu0 0.0
      %356 = vmatprep.subr.mxu0 0.0
      %357 = vmatpush1.msra.mxu0 0.0
      %358 = vmatprep.subr.mxu0 0.0
      %359 = vmatpush1.msra.mxu0 0.0
      %360 = vmatprep.mubr.f32.mxu0 0.0
      %361 = vmatmul.mubr.f32.gmra.mrb[0].mxu0 %v266
      %v362 = vpop.f32.mrb[0].mxu0
      %v363 = vadd.f32 %v294, %v362
      %v364 = vpop.f32.mrb[0].mxu0
      %365 = vmatprep.mubr.f32.mxu0 0.0
      %366 = vmatmul.mubr.f32.gmra.mrb[0].mxu0 %v267
      %v367 = vpop.f32.mrb[0].mxu0
      %v368 = vadd.f32 %v294, %v367
      %v369 = vpop.f32.mrb[0].mxu0
      %370 = vmatprep.mubr.f32.mxu0 0.0
      %371 = vmatmul.mubr.f32.gmra.mrb[0].mxu0 %v268
      %v372 = vpop.f32.mrb[0].mxu0
      %v373 = vadd.f32 %v294, %v372
      %v374 = vpop.f32.mrb[0].mxu0
      %375 = vmatprep.mubr.f32.mxu0 0.0
      %376 = vmatmul.mubr.f32.gmra.mrb[0].mxu0 %v269
      %v377 = vpop.f32.mrb[0].mxu0
      %v378 = vadd.f32 %v294, %v377
      %v379 = vpop.f32.mrb[0].mxu0
      %380 = vmatprep.mubr.f32.mxu0 0.0
      %381 = vmatmul.mubr.f32.gmra.mrb[0].mxu0 %v270
      %v382 = vpop.f32.mrb[0].mxu0
      %v383 = vadd.f32 %v294, %v382
      %v384 = vpop.f32.mrb[0].mxu0
      %385 = vmatprep.mubr.f32.mxu0 0.0
      %386 = vmatmul.mubr.f32.gmra.mrb[0].mxu0 %v271
      %v387 = vpop.f32.mrb[0].mxu0
      %v388 = vadd.f32 %v294, %v387
      %v389 = vpop.f32.mrb[0].mxu0
      %390 = vmatprep.mubr.f32.mxu0 0.0
      %391 = vmatmul.mubr.f32.gmra.mrb[0].mxu0 %v272
      %v392 = vpop.f32.mrb[0].mxu0
      %v393 = vadd.f32 %v294, %v392
      %v394 = vpop.f32.mrb[0].mxu0
      %395 = vmatprep.mubr.f32.mxu0 0.0
      %396 = vmatmul.mubr.f32.gmra.mrb[0].mxu0 %v273
      %v397 = vpop.f32.mrb[0].mxu0
      %v398 = vadd.f32 %v294, %v397
      %v399 = vpop.f32.mrb[0].mxu0
      %400 = vdwg.mxu0
      %401 = vst [vmem:[#allocation3] sm:$0xff] %v363
      %402 = vst [vmem:[#allocation3 + $0x8] sm:$0xff] %v368
      %403 = vst [vmem:[#allocation3 + $0x10] sm:$0xff] %v373
      %404 = vst [vmem:[#allocation3 + $0x18] sm:$0xff] %v378
      %405 = vst [vmem:[#allocation3 + $0x20] sm:$0xff] %v383
      %406 = vst [vmem:[#allocation3 + $0x28] sm:$0xff] %v388
      %407 = vst [vmem:[#allocation3 + $0x30] sm:$0xff] %v393
      %408 = vst [vmem:[#allocation3 + $0x38] sm:$0xff] %v398
      %s409 = scalar_lea.vmem [#allocation2], 8
      %v410 = vld [vmem:[%s409] sm:$0xff]
      %v411 = vld [vmem:[%s409 + $0x8] sm:$0xff]
      %v412 = vld [vmem:[%s409 + $0x10] sm:$0xff]
      %v413 = vld [vmem:[%s409 + $0x18] sm:$0xff]
      %v414 = vld [vmem:[%s409 + $0x20] sm:$0xff]
      %v415 = vld [vmem:[%s409 + $0x28] sm:$0xff]
      %v416 = vld [vmem:[%s409 + $0x30] sm:$0xff]
      %v417 = vld [vmem:[%s409 + $0x38] sm:$0xff]
      %s418 = scalar_lea.vmem %s177, 128
      %v419 = vld [vmem:[%s418] sm:$0xff]
      %v420 = vld [vmem:[%s418 + $0x8] sm:$0xff]
      %v421 = vld [vmem:[%s418 + $0x10] sm:$0xff]
      %v422 = vld [vmem:[%s418 + $0x18] sm:$0xff]
      %v423 = vld [vmem:[%s418 + $0x20] sm:$0xff]
      %v424 = vld [vmem:[%s418 + $0x28] sm:$0xff]
      %v425 = vld [vmem:[%s418 + $0x30] sm:$0xff]
      %v426 = vld [vmem:[%s418 + $0x38] sm:$0xff]
      %v427 = vld [vmem:[%s418 + $0x40] sm:$0xff]
      %v428 = vld [vmem:[%s418 + $0x48] sm:$0xff]
      %v429 = vld [vmem:[%s418 + $0x50] sm:$0xff]
      %v430 = vld [vmem:[%s418 + $0x58] sm:$0xff]
      %v431 = vld [vmem:[%s418 + $0x60] sm:$0xff]
      %v432 = vld [vmem:[%s418 + $0x68] sm:$0xff]
      %v433 = vld [vmem:[%s418 + $0x70] sm:$0xff]
      %v434 = vld [vmem:[%s418 + $0x78] sm:$0xff]
      %435 = vmatprep.subr.mxu0 0.0
      %436 = vmatpush1.msra.mxu0 %v419
      %437 = vmatprep.subr.mxu0 0.0
      %438 = vmatpush1.msra.mxu0 %v420
      %439 = vmatprep.subr.mxu0 0.0
      %440 = vmatpush1.msra.mxu0 %v421
      %441 = vmatprep.subr.mxu0 0.0
      %442 = vmatpush1.msra.mxu0 %v422
      %443 = vmatprep.subr.mxu0 0.0
      %444 = vmatpush1.msra.mxu0 %v423
      %445 = vmatprep.subr.mxu0 0.0
      %446 = vmatpush1.msra.mxu0 %v424
      %447 = vmatprep.subr.mxu0 0.0
      %448 = vmatpush1.msra.mxu0 %v425
      %449 = vmatprep.subr.mxu0 0.0
      %450 = vmatpush1.msra.mxu0 %v426
      %451 = vmatprep.subr.mxu0 0.0
      %452 = vmatpush1.msra.mxu0 %v427
      %453 = vmatprep.subr.mxu0 0.0
      %454 = vmatpush1.msra.mxu0 %v428
      %455 = vmatprep.subr.mxu0 0.0
      %456 = vmatpush1.msra.mxu0 %v429
      %457 = vmatprep.subr.mxu0 0.0
      %458 = vmatpush1.msra.mxu0 %v430
      %459 = vmatprep.subr.mxu0 0.0
      %460 = vmatpush1.msra.mxu0 %v431
      %461 = vmatprep.subr.mxu0 0.0
      %462 = vmatpush1.msra.mxu0 %v432
      %463 = vmatprep.subr.mxu0 0.0
      %464 = vmatpush1.msra.mxu0 %v433
      %465 = vmatprep.subr.mxu0 0.0
      %466 = vmatpush1.msra.mxu0 %v434
      %467 = vmatprep.subr.mxu0 0.0
      %468 = vmatpush1.msra.mxu0 0.0
      %469 = vmatprep.subr.mxu0 0.0
      %470 = vmatpush1.msra.mxu0 0.0
      %471 = vmatprep.subr.mxu0 0.0
      %472 = vmatpush1.msra.mxu0 0.0
      %473 = vmatprep.subr.mxu0 0.0
      %474 = vmatpush1.msra.mxu0 0.0
      %475 = vmatprep.subr.mxu0 0.0
      %476 = vmatpush1.msra.mxu0 0.0
      %477 = vmatprep.subr.mxu0 0.0
      %478 = vmatpush1.msra.mxu0 0.0
      %479 = vmatprep.subr.mxu0 0.0
      %480 = vmatpush1.msra.mxu0 0.0
      %481 = vmatprep.subr.mxu0 0.0
      %482 = vmatpush1.msra.mxu0 0.0
      %483 = vmatprep.subr.mxu0 0.0
      %484 = vmatpush1.msra.mxu0 0.0
      %485 = vmatprep.subr.mxu0 0.0
      %486 = vmatpush1.msra.mxu0 0.0
      %487 = vmatprep.subr.mxu0 0.0
      %488 = vmatpush1.msra.mxu0 0.0
      %489 = vmatprep.subr.mxu0 0.0
      %490 = vmatpush1.msra.mxu0 0.0
      %491 = vmatprep.subr.mxu0 0.0
      %492 = vmatpush1.msra.mxu0 0.0
      %493 = vmatprep.subr.mxu0 0.0
      %494 = vmatpush1.msra.mxu0 0.0
      %495 = vmatprep.subr.mxu0 0.0
      %496 = vmatpush1.msra.mxu0 0.0
      %497 = vmatprep.subr.mxu0 0.0
      %498 = vmatpush1.msra.mxu0 0.0
      %499 = vmatprep.mubr.f32.mxu0 0.0
      %500 = vmatmul.mubr.f32.gmra.mrb[0].mxu0 %v410
      %v501 = vpop.f32.mrb[0].mxu0
      %v502 = vadd.f32 0.0, %v501
      %v503 = vpop.f32.mrb[0].mxu0
      %504 = vmatprep.mubr.f32.mxu0 0.0
      %505 = vmatmul.mubr.f32.gmra.mrb[0].mxu0 %v411
      %v506 = vpop.f32.mrb[0].mxu0
      %v507 = vadd.f32 0.0, %v506
      %v508 = vpop.f32.mrb[0].mxu0
      %509 = vmatprep.mubr.f32.mxu0 0.0
      %510 = vmatmul.mubr.f32.gmra.mrb[0].mxu0 %v412
      %v511 = vpop.f32.mrb[0].mxu0
      %v512 = vadd.f32 0.0, %v511
      %v513 = vpop.f32.mrb[0].mxu0
      %514 = vmatprep.mubr.f32.mxu0 0.0
      %515 = vmatmul.mubr.f32.gmra.mrb[0].mxu0 %v413
      %v516 = vpop.f32.mrb[0].mxu0
      %v517 = vadd.f32 0.0, %v516
      %v518 = vpop.f32.mrb[0].mxu0
      %519 = vmatprep.mubr.f32.mxu0 0.0
      %520 = vmatmul.mubr.f32.gmra.mrb[0].mxu0 %v414
      %v521 = vpop.f32.mrb[0].mxu0
      %v522 = vadd.f32 0.0, %v521
      %v523 = vpop.f32.mrb[0].mxu0
      %524 = vmatprep.mubr.f32.mxu0 0.0
      %525 = vmatmul.mubr.f32.gmra.mrb[0].mxu0 %v415
      %v526 = vpop.f32.mrb[0].mxu0
      %v527 = vadd.f32 0.0, %v526
      %v528 = vpop.f32.mrb[0].mxu0
      %529 = vmatprep.mubr.f32.mxu0 0.0
      %530 = vmatmul.mubr.f32.gmra.mrb[0].mxu0 %v416
      %v531 = vpop.f32.mrb[0].mxu0
      %v532 = vadd.f32 0.0, %v531
      %v533 = vpop.f32.mrb[0].mxu0
      %534 = vmatprep.mubr.f32.mxu0 0.0
      %535 = vmatmul.mubr.f32.gmra.mrb[0].mxu0 %v417
      %v536 = vpop.f32.mrb[0].mxu0
      %v537 = vadd.f32 0.0, %v536
      %v538 = vpop.f32.mrb[0].mxu0
      %539 = vdwg.mxu0
      %v540 = vld [vmem:[#allocation3] sm:$0xff]
      %v541 = vld [vmem:[#allocation3 + $0x8] sm:$0xff]
      %v542 = vld [vmem:[#allocation3 + $0x10] sm:$0xff]
      %v543 = vld [vmem:[#allocation3 + $0x18] sm:$0xff]
      %v544 = vld [vmem:[#allocation3 + $0x20] sm:$0xff]
      %v545 = vld [vmem:[#allocation3 + $0x28] sm:$0xff]
      %v546 = vld [vmem:[#allocation3 + $0x30] sm:$0xff]
      %v547 = vld [vmem:[#allocation3 + $0x38] sm:$0xff]
      %v548 = vadd.f32 %v540, %v502
      %v549 = vadd.f32 %v541, %v507
      %v550 = vadd.f32 %v542, %v512
      %v551 = vadd.f32 %v543, %v517
      %v552 = vadd.f32 %v544, %v522
      %v553 = vadd.f32 %v545, %v527
      %v554 = vadd.f32 %v546, %v532
      %v555 = vadd.f32 %v547, %v537
      %556 = vst [vmem:[#allocation3] sm:$0xff] %v548
      %557 = vst [vmem:[#allocation3 + $0x8] sm:$0xff] %v549
      %558 = vst [vmem:[#allocation3 + $0x10] sm:$0xff] %v550
      %559 = vst [vmem:[#allocation3 + $0x18] sm:$0xff] %v551
      %560 = vst [vmem:[#allocation3 + $0x20] sm:$0xff] %v552
      %561 = vst [vmem:[#allocation3 + $0x28] sm:$0xff] %v553
      %562 = vst [vmem:[#allocation3 + $0x30] sm:$0xff] %v554
      %563 = vst [vmem:[#allocation3 + $0x38] sm:$0xff] %v555
      %v564 = vld [vmem:[#allocation3] sm:$0xff]
      %v565 = vld [vmem:[#allocation3 + $0x8] sm:$0xff]
      %v566 = vld [vmem:[#allocation3 + $0x10] sm:$0xff]
      %v567 = vld [vmem:[#allocation3 + $0x18] sm:$0xff]
      %v568 = vld [vmem:[#allocation3 + $0x20] sm:$0xff]
      %v569 = vld [vmem:[#allocation3 + $0x28] sm:$0xff]
      %v570 = vld [vmem:[#allocation3 + $0x30] sm:$0xff]
      %v571 = vld [vmem:[#allocation3 + $0x38] sm:$0xff]
      %572 = vst [vmem:[%s192] sm:$0xff] %v564
      %573 = vst [vmem:[%s192 + $0x8] sm:$0xff] %v565
      %574 = vst [vmem:[%s192 + $0x10] sm:$0xff] %v566
      %575 = vst [vmem:[%s192 + $0x18] sm:$0xff] %v567
      %576 = vst [vmem:[%s192 + $0x20] sm:$0xff] %v568
      %577 = vst [vmem:[%s192 + $0x28] sm:$0xff] %v569
      %578 = vst [vmem:[%s192 + $0x30] sm:$0xff] %v570
      %579 = vst [vmem:[%s192 + $0x38] sm:$0xff] %v571
      %s580 = smul.u32 8, %s20
      %p581 = scmp.lt.s32.totalorder %s19, 1
      %s582 = scalar_select %p581, %s19, 1
      %p583 = scmp.lt.s32.totalorder %s580, 7
      %s584 = scalar_select %p583, %s580, 7
      %p585 = scmp.lt.s32.totalorder %s21, 0
      %s586 = scalar_select %p585, %s21, 0
      %s587 = sadd.s32 %s586, %s584
      %s588 = smul.addr %s582, 8
      %s589 = sadd.s32 %s587, %s588
      %s590 = smul.addr %s589, 8
      %s591 = scalar_lea.vmem %s3, %s590
      // Predicated region
      $region67: #{conv2d_static_same_padding.1} parent=27 // pred_check
        %p592 = pneg %p107
      $region68: #{conv2d_static_same_padding.1} parent=27 // pred_check_branch
        %594 = sbr.rel (%p592) target = $region70
      $region69: #{conv2d_static_same_padding.1} parent=27 // pred_region
        %s595 = smul.u32 8, %s20
      $region70: #{conv2d_static_same_padding.1} parent=27 // pred_fallthru
        _
    $region28: #{conv2d_static_same_padding.1} parent=5 // pred_fallthru
      _
    %p596 = scmp.le.s32.totalorder 2, %s9
    // Predicated region
    $region71: #{conv2d_static_same_padding.1} parent=5 // pred_check
      %p597 = pneg %p596
    $region72: #{conv2d_static_same_padding.1} parent=5 // pred_check_branch
      %599 = sbr.rel (%p597) target = $region74
    $region73: #{conv2d_static_same_padding.1} parent=5 // pred_region
      %s600 = ssub.s32 %s9, 2
      // Predicated region
      $region75: #{conv2d_static_same_padding.1} parent=73 // pred_check
        %p601 = pneg %p113
      $region76: #{conv2d_static_same_padding.1} parent=73 // pred_check_branch
        %603 = sbr.rel (%p601) target = $region78
      $region77: #{conv2d_static_same_padding.1} parent=73 // pred_region
        %s604 = smul.u32 8, %s23
        %p605 = scmp.lt.s32.totalorder %s22, 1
        %s606 = scalar_select %p605, %s22, 1
        %p607 = scmp.lt.s32.totalorder %s604, 7
        %s608 = scalar_select %p607, %s604, 7
        %p609 = scmp.lt.s32.totalorder %s24, 0
        %s610 = scalar_select %p609, %s24, 0
        %s611 = sadd.s32 %s610, %s608
        %s612 = smul.addr %s606, 8
        %s613 = sadd.s32 %s611, %s612
        %s614 = smul.addr %s613, 8
        %s615 = scalar_lea.vmem %s3, %s614
      $region78: #{conv2d_static_same_padding.1} parent=73 // pred_fallthru
        _
    $region74: #{conv2d_static_same_padding.1} parent=5 // pred_fallthru
      _
  $region6: #{conv2d_static_same_padding.1} parent=0 // loop_footer
    %s13 = sadd.s32 1, %s9
  $region7: #{conv2d_static_same_padding.1} parent=0 // loop_footer_branch
    %8 = sbr.rel target = $region3
  $region8: #{conv2d_static_same_padding.1} parent=0 // loop_exit
    _
  %616 = vsyncmov [#allocation4]
  %s617 = vpop.sfrf %616
  %p618 = scmp.eq.s32.totalorder %s617, 0
  %p619 = pneg %p618
  %621 = shalt.err (%p619)

</llo_original>
